<compile_context>
chip_gen: v5e
topology: v5e:2x2
jax: 0.10.0
libtpu: 0.0.40
codegen_flags: <defaults>
</compile_context>

<pallas_src>
import functools
from typing import NamedTuple

import jax
import jax.numpy as jnp
from jax.experimental import pallas as pl
from jax.experimental.pallas import tpu as pltpu

_LANE = 128                       # last block dim must be a multiple of this
_K_QUANTUM = 512                  # K padding / tile quantum (mult of 8 and 128)
_X_RESIDENT_MAX_BYTES = 4 << 20   # keep x VMEM-resident if 2 buffers fit here


def _cdiv(a: int, b: int) -> int:
    return -(-a // b)


def _round_up(a: int, m: int) -> int:
    return _cdiv(a, m) * m


def _hw_budget():
    """(tk_max, vmem_limit_bytes) per TPU generation.

    128-MiB-VMEM generations (v5e/v6e) get bigger K tiles and more scoped
    VMEM; 64-MiB v7x (and unknown targets) stay conservatively capped.
    """
    vmem_cap = 64 << 20
    try:
        vmem_cap = int(getattr(pltpu.get_tpu_info(), "vmem_capacity_bytes", vmem_cap))
    except Exception:
        pass
    if vmem_cap >= (128 << 20):
        return 32768, 96 << 20     # v5e / v6e
    return 16384, 44 << 20         # v7x or unknown


def _balanced_tile(size, tile_max, quantum, min_tiles=1):
    """Tile size (multiple of `quantum`, ~<= tile_max) whose multiples cover
    `size` rounded up to `quantum` -- avoids padding all the way to tile_max."""
    size_q = _round_up(max(size, 1), quantum)
    if size_q < min_tiles * quantum:
        min_tiles = 1
    n = max(min_tiles, _cdiv(size_q, tile_max))
    tile = _round_up(_cdiv(size_q, n), quantum)
    n = max(min_tiles, _cdiv(size_q, tile))
    return tile, tile * n, n


class Plan(NamedTuple):
    n_input: int
    n_hidden: int
    tk: int
    Kp: int
    nk: int
    tn: int
    Np: int
    nn: int
    vmem_limit: int


def make_plan(n_input, n_hidden, tk_max=None, tn_max=256):
    hw_tk, vmem_limit = _hw_budget()
    if tk_max is None:
        tk_max = hw_tk
    tk, Kp, nk = _balanced_tile(n_input, tk_max, _K_QUANTUM)
    # min_tiles=2: guarantee the "parallel" N axis can feed both v7x TCs.
    tn, Np, nn = _balanced_tile(n_hidden, tn_max, _LANE, min_tiles=2)
    return Plan(n_input, n_hidden, tk, Kp, nk, tn, Np, nn, vmem_limit)


def prepare_params(w_t, b, plan):
    """One-time (init-time) pad + bf16 cast of the Linear parameters.

    w_t: (n_input, n_hidden) = torch weight transposed; b: (n_hidden,).
    Doing this once keeps per-call HBM traffic at a single bf16 read of W.
    """
    K, N = w_t.shape
    assert (K, N) == (plan.n_input, plan.n_hidden)
    w_p = jnp.pad(w_t, ((0, plan.Kp - K), (0, plan.Np - N))).astype(jnp.bfloat16)
    b_p = jnp.pad(b, (0, plan.Np - N)).astype(jnp.float32).reshape(1, plan.Np)
    return w_p, b_p


def _dann_kernel(x_ref, w_ref, b_ref, o_ref, *, x_resident):
    """Grid = (N tiles [parallel], K tiles [arbitrary, reduction]).

    Accumulate x_chunk @ w_tile into the f32 output block (resident across K);
    fuse bias + ReLU on the last K step.
    """
    k = pl.program_id(1)

    @pl.when(k == 0)
    def _():
        o_ref[...] = jnp.zeros_like(o_ref)

    if x_resident:
        x_chunk = x_ref[k]        # whole (nk, B, tk) x held resident in VMEM
    else:
        x_chunk = x_ref[...]      # (B, tk) strip streamed per K step

    o_ref[...] += jnp.dot(x_chunk, w_ref[...], preferred_element_type=jnp.float32)

    @pl.when(k == pl.num_programs(1) - 1)
    def _():
        # Dropout(p=0.5) in eval/inference mode == identity.
        o_ref[...] = jnp.maximum(o_ref[...] + b_ref[...], 0.0)


@functools.partial(jax.jit, static_argnames=("plan",))
def dann_backbone_forward(x, w_p, b_p, plan):
    """x: (B, ...) f32; w_p/b_p from prepare_params(). Returns (B, n_hidden) f32."""
    B = x.shape[0]
    x2d = x.reshape(B, -1)                     # torch x.view(x.size(0), -1)
    assert x2d.shape[1] == plan.n_input
    # x is tiny next to W; per-call pad + bf16 cast here is negligible traffic.
    x2d = jnp.pad(x2d.astype(jnp.bfloat16), ((0, 0), (0, plan.Kp - plan.n_input)))

    x_resident = 2 * B * plan.Kp * 2 <= _X_RESIDENT_MAX_BYTES
    if x_resident:
        # (nk, B, tk): constant block index -> DMA'd once, sliced via x_ref[k].
        x_in = x2d.reshape(B, plan.nk, plan.tk).transpose(1, 0, 2)
        x_spec = pl.BlockSpec((plan.nk, B, plan.tk), lambda n, k: (0, 0, 0))
    else:
        x_in = x2d
        x_spec = pl.BlockSpec((B, plan.tk), lambda n, k: (0, k))

    out = pl.pallas_call(
        functools.partial(_dann_kernel, x_resident=x_resident),
        out_shape=jax.ShapeDtypeStruct((B, plan.Np), jnp.float32),
        grid_spec=pltpu.PrefetchScalarGridSpec(
            num_scalar_prefetch=0,
            grid=(plan.nn, plan.nk),
            in_specs=[
                x_spec,
                pl.BlockSpec((plan.tk, plan.tn), lambda n, k: (k, n)),   # W^T tile
                pl.BlockSpec((1, plan.tn), lambda n, k: (0, n)),         # bias
            ],
            out_specs=pl.BlockSpec((B, plan.tn), lambda n, k: (0, n)),
        ),
        compiler_params=pltpu.CompilerParams(
            dimension_semantics=("parallel", "arbitrary"),
            vmem_limit_bytes=plan.vmem_limit,
        ),
    )(x_in, w_p, b_p)

    return out[:, : plan.n_hidden]


def _init_params(key, n_input, n_hidden):
    """nn.Linear default init: U(-1/sqrt(K), 1/sqrt(K)); weight kept transposed."""
    kw, kb = jax.random.split(key)
    bound = 1.0 / jnp.sqrt(jnp.float32(n_input))
    w_t = jax.random.uniform(kw, (n_input, n_hidden), jnp.float32, -bound, bound)
    b = jax.random.uniform(kb, (n_hidden,), jnp.float32, -bound, bound)
    return w_t, b


if __name__ == "__main__":
    key = jax.random.PRNGKey(0)
    kx, kp = jax.random.split(key)

    B, C, H, W = 2, 4, 16, 16            # n_input = 4*16*16 = 1024
    n_hidden = 256                       # module default feature dim
    n_input = C * H * W

    x = jax.random.normal(kx, (B, C, H, W), jnp.float32)
    w_t, b = _init_params(kp, n_input, n_hidden)
    ref = jnp.maximum(x.reshape(B, -1) @ w_t + b, 0.0)

    # One-time parameter prep (pad + bf16 cast) at "init" time, not per call.
    plan = make_plan(n_input, n_hidden)
    w_p, b_p = prepare_params(w_t, b, plan)
    out = jax.block_until_ready(dann_backbone_forward(x, w_p, b_p, plan))
    assert out.shape == (B, n_hidden)
    # bf16 matmul inputs with f32 accumulation -> small tolerance vs f32 ref.
    assert jnp.allclose(out, ref, atol=5e-2, rtol=5e-2)

    # Small-tile plan: exercises multi-tile K accumulation, the resident-x
    # dynamic x_ref[k] slice, and the 2-way "parallel" N split.
    plan2 = make_plan(n_input, n_hidden, tk_max=512, tn_max=128)
    w_p2, b_p2 = prepare_params(w_t, b, plan2)
    out2 = jax.block_until_ready(dann_backbone_forward(x, w_p2, b_p2, plan2))
    assert jnp.allclose(out2, ref, atol=5e-2, rtol=5e-2)

    print("KERNEL_OK")
</pallas_src>

<mosaic_0001>
module attributes {stable_mosaic.version = 11 : i64} {
  func.func @_dann_kernel(%arg0: i32, %arg1: i32, %arg2: memref<1x2x1024xbf16, #tpu.memory_space<vmem>>, %arg3: memref<1024x128xbf16, #tpu.memory_space<vmem>>, %arg4: memref<1x128xf32, #tpu.memory_space<vmem>>, %arg5: memref<2x128xf32, #tpu.memory_space<vmem>>) attributes {dimension_semantics = [#tpu.dimension_semantics<parallel>, #tpu.dimension_semantics<arbitrary>], iteration_bounds = array<i64: 2, 1>, scalar_prefetch = 0 : i64, scratch_operands = 0 : i64, tpu.core_type = #tpu.core_type<tc>, window_params = [{pipeline_mode = #tpu.pipeline_mode<synchronous>, transform_indices = @transform_0, window_bounds = array<i64: 1, 2, 1024>}, {transform_indices = @transform_1, window_bounds = array<i64: 1024, 128>}, {transform_indices = @transform_2, window_bounds = array<i64: 1, 128>}, {transform_indices = @transform_3, window_bounds = array<i64: 2, 128>}]} {
    %c0_i32 = arith.constant 0 : i32
    %0 = arith.cmpi eq, %arg1, %c0_i32 : i32
    %1 = arith.extui %0 : i1 to i32
    %c0_i32_0 = arith.constant 0 : i32
    %2 = arith.cmpi ne, %1, %c0_i32_0 : i32
    scf.if %2 {
      %cst_10 = arith.constant 0.000000e+00 : f32
      %14 = vector.broadcast %cst_10 : f32 to vector<2x128xf32>
      %c0_11 = arith.constant 0 : index
      %c0_12 = arith.constant 0 : index
      %15 = vector.load %arg5[%c0_11, %c0_12] : memref<2x128xf32, #tpu.memory_space<vmem>>, vector<2x128xf32>
      tpu.vector_store %arg5[%c0_11, %c0_12], %14 {strides = array<i32>} : memref<2x128xf32, #tpu.memory_space<vmem>>, vector<2x128xf32>,
    } else {
    }
    %3 = arith.index_cast %arg1 : i32 to index
    %c0 = arith.constant 0 : index
    %c0_1 = arith.constant 0 : index
    %4 = vector.load %arg2[%3, %c0, %c0_1] : memref<1x2x1024xbf16, #tpu.memory_space<vmem>>, vector<1x2x1024xbf16>
    %5 = vector.shape_cast %4 : vector<1x2x1024xbf16> to vector<2x1024xbf16>
    %c0_2 = arith.constant 0 : index
    %c0_3 = arith.constant 0 : index
    %6 = vector.load %arg5[%c0_2, %c0_3] : memref<2x128xf32, #tpu.memory_space<vmem>>, vector<2x128xf32>
    %c0_4 = arith.constant 0 : index
    %c0_5 = arith.constant 0 : index
    %7 = vector.load %arg3[%c0_4, %c0_5] : memref<1024x128xbf16, #tpu.memory_space<vmem>>, vector<1024x128xbf16>
    %cst = arith.constant dense<0.000000e+00> : vector<2x128xf32>
    %8 = tpu.matmul %5, %7, %cst {dimension_numbers = #tpu.dot_dimension_numbers<[1], [0], [0], [1], [0, 0, 1, 1], [], []>} : vector<2x1024xbf16>, vector<1024x128xbf16>, vector<2x128xf32> -> vector<2x128xf32>
    %9 = arith.addf %6, %8 : vector<2x128xf32>
    %c0_6 = arith.constant 0 : index
    %c0_7 = arith.constant 0 : index
    %10 = vector.load %arg5[%c0_6, %c0_7] : memref<2x128xf32, #tpu.memory_space<vmem>>, vector<2x128xf32>
    tpu.vector_store %arg5[%c0_6, %c0_7], %9 {strides = array<i32>} : memref<2x128xf32, #tpu.memory_space<vmem>>, vector<2x128xf32>,
    %c0_i32_8 = arith.constant 0 : i32
    %11 = arith.cmpi eq, %arg1, %c0_i32_8 : i32
    %12 = arith.extui %11 : i1 to i32
    %c0_i32_9 = arith.constant 0 : i32
    %13 = arith.cmpi ne, %12, %c0_i32_9 : i32
    scf.if %13 {
      %c0_10 = arith.constant 0 : index
      %c0_11 = arith.constant 0 : index
      %14 = vector.load %arg5[%c0_10, %c0_11] : memref<2x128xf32, #tpu.memory_space<vmem>>, vector<2x128xf32>
      %c0_12 = arith.constant 0 : index
      %c0_13 = arith.constant 0 : index
      %15 = vector.load %arg4[%c0_12, %c0_13] : memref<1x128xf32, #tpu.memory_space<vmem>>, vector<1x128xf32>
      %16 = vector.broadcast %15 : vector<1x128xf32> to vector<2x128xf32>
      %17 = arith.addf %14, %16 : vector<2x128xf32>
      %cst_14 = arith.constant 0.000000e+00 : f32
      %18 = vector.broadcast %cst_14 : f32 to vector<2x128xf32>
      %19 = arith.maximumf %17, %18 : vector<2x128xf32>
      %c0_15 = arith.constant 0 : index
      %c0_16 = arith.constant 0 : index
      %20 = vector.load %arg5[%c0_15, %c0_16] : memref<2x128xf32, #tpu.memory_space<vmem>>, vector<2x128xf32>
      tpu.vector_store %arg5[%c0_15, %c0_16], %19 {strides = array<i32>} : memref<2x128xf32, #tpu.memory_space<vmem>>, vector<2x128xf32>,
    } else {
    }
    return
  }
  func.func @transform_0(%arg0: i32, %arg1: i32) -> (i32, i32, i32) {
    %c0_i32 = arith.constant 0 : i32
    %c0_i32_0 = arith.constant 0 : i32
    %c0_i32_1 = arith.constant 0 : i32
    %c0_i32_2 = arith.constant 0 : i32
    return %c0_i32, %c0_i32_0, %c0_i32_1 : i32, i32, i32
  }
  func.func @transform_1(%arg0: i32, %arg1: i32) -> (i32, i32) {
    %c0_i32 = arith.constant 0 : i32
    return %arg1, %arg0 : i32, i32
  }
  func.func @transform_2(%arg0: i32, %arg1: i32) -> (i32, i32) {
    %c0_i32 = arith.constant 0 : i32
    %c0_i32_0 = arith.constant 0 : i32
    return %c0_i32, %arg0 : i32, i32
  }
  func.func @transform_3(%arg0: i32, %arg1: i32) -> (i32, i32) {
    %c0_i32 = arith.constant 0 : i32
    %c0_i32_0 = arith.constant 0 : i32
    return %c0_i32, %arg0 : i32, i32
  }
}

</mosaic_0001>

<llo_original>
// kernel: dann_backbone_forward.1
$region0: #{dann_backbone_forward.1}
  #allocation0 [shape = 'u32[]', space=smem, size = 0x4, offset = 0x4, fixed_abs, tag = 'smem constant byte address 0x4 - core index']
  #allocation1 [shape = 'u32[72,128]{1,0:T(1,128)}', space=vmem, size = 0x9000, scoped, tag = 'internal scratch']
  %s0 = inlined_call_operand.vmem [shape: bf16[1,2,1024], index: 0, kind: input, shape index: {}]
  %s1 = inlined_call_operand.hbm [shape: bf16[1024,256], index: 1, kind: input, shape index: {}]
  %s2 = inlined_call_operand.vmem [shape: f32[1,256], index: 2, kind: input, shape index: {}]
  %s3 = inlined_call_operand.hbm [shape: f32[2,256], index: 3, kind: output, shape index: {}]
  %s4 = sld [smem:[#allocation0]]
  $region57: #{dann_backbone_forward.1} parent=0
    _
  %s6 = ssub.s32 1, %s4
  %s7 = scalar_select 0, %s6, %s4
  $region1: #{dann_backbone_forward.1} parent=0
    #allocation2 [shape = 'u8[524288]{0}', space=vmem, size = 0x80000, scoped, tag = 'input window, operand 1']
    #allocation3 [shape = 's32[2]{0}', space=sflag, size = 0x8, scoped, tag = 'scoped memory for dann_backbone_forward.1']
    #allocation4 [shape = 's32[2]{0}', space=sflag, size = 0x8, scoped, tag = 'scoped memory for dann_backbone_forward.1']
    #allocation5 [shape = 'u8[2048]{0}', space=vmem, size = 0x800, scoped, tag = 'output window, operand 0']
    %8 = vsyncpa [#allocation3], 0
    %s9 = scalar_lea.sflag [#allocation3], 1
    %10 = vsyncpa %s9, 0
    %11 = vsyncpa [#allocation4], 0
    %s12 = scalar_lea.sflag [#allocation4], 1
    %13 = vsyncpa %s12, 0
    loop: start=0, step=1, limit=4
    $region2: #{dann_backbone_forward.1} parent=1 // loop_pre_header
      _
    $region3: #{dann_backbone_forward.1} parent=1 // loop_header
      %s15 = sphi 0, %s19
      %p16 = scmp.ge.s32.totalorder %s15, 4
      %s22 = sphi 0, %s34
      %s23 = sphi 0, %s30
      %s24 = sphi 0, %s22
      %s25 = sphi 0, %s23
      %s26 = sphi 0, %s24
      %s27 = sphi 0, %s25
      %s35 = sphi 0, %s35
      %s37 = sphi 0, %s35
      %s38 = sphi 0, %s37
      %s52 = sphi 0, %s38
      %s60 = sphi 0, %s62
      %s63 = sphi 0, %s60
      %s64 = sphi 0, %s63
      %s80 = sphi 0, %s64
      %s86 = sphi 0, %s88
      %s89 = sphi 0, %s86
      %s90 = sphi 0, %s89
      %s106 = sphi 0, %s90
      %s112 = sphi 0, %s114
      %s115 = sphi 0, %s112
      %s116 = sphi 0, %s115
      %s132 = sphi 0, %s116
    $region4: #{dann_backbone_forward.1} parent=1 // loop_header_branch
      %18 = sbr.rel (%p16) target = $region8
    $region5: #{dann_backbone_forward.1} parent=1 // loop_body
      %s20 = ssub.s32 %s15, 1
      %s21 = ssub.s32 %s15, 2
      %s28 = sadd.s32 1, %s23
      %p29 = scmp.ge.s32.totalorder %s28, 1
      %s30 = scalar_select %p29, 0, %s28
      %s31 = sadd.s32 1, %s22
      %s32 = scalar_select %p29, %s31, %s22
      %p33 = scmp.ge.s32.totalorder %s32, 2
      %s34 = scalar_select %p33, 0, %s32
      %s36 = sadd.s32 %s35, 1
      %p39 = scmp.eq.s32.totalorder %s15, 1
      %p40 = scmp.ne.s32.totalorder %s35, %s37
      %p41 = scmp.eq.s32.totalorder %s15, 0
      %p42 = por %p40, %p41
      %p43 = scmp.ne.s32.totalorder %s35, %s37
      %p44 = scmp.eq.s32.totalorder %s20, 1
      %p45 = por %p43, %p44
      %p46 = scmp.ne.s32.totalorder %s37, %s38
      %p47 = scmp.eq.s32.totalorder %s20, 0
      %p48 = por %p46, %p47
      %p49 = scmp.ne.s32.totalorder %s37, %s38
      %p50 = scmp.eq.s32.totalorder %s21, 1
      %p51 = por %p49, %p50
      %p53 = scmp.ne.s32.totalorder %s38, %s52
      %p54 = scmp.eq.s32.totalorder %s21, 0
      %p55 = por %p53, %p54
      %s56 = ssub.s32 %s23, %s30
      %s57 = ssub.s32 %s22, %s34
      %s58 = sor.u32 %s56, %s57
      %p59 = scmp.eq.s32.totalorder %s58, 0
      %s61 = sadd.s32 %s60, 1
      %s62 = scalar_select %p59, %s60, %s61
      %p65 = pneg %p59
      %p66 = scmp.eq.s32.totalorder %s15, 1
      %p67 = por %p65, %p66
      %p68 = scmp.ne.s32.totalorder %s60, %s63
      %p69 = scmp.eq.s32.totalorder %s15, 0
      %p70 = por %p68, %p69
      %p71 = scmp.ne.s32.totalorder %s60, %s63
      %p72 = scmp.eq.s32.totalorder %s20, 1
      %p73 = por %p71, %p72
      %p74 = scmp.ne.s32.totalorder %s63, %s64
      %p75 = scmp.eq.s32.totalorder %s20, 0
      %p76 = por %p74, %p75
      %p77 = scmp.ne.s32.totalorder %s63, %s64
      %p78 = scmp.eq.s32.totalorder %s21, 1
      %p79 = por %p77, %p78
      %p81 = scmp.ne.s32.totalorder %s64, %s80
      %p82 = scmp.eq.s32.totalorder %s21, 0
      %p83 = por %p81, %p82
      %s84 = ssub.s32 %s22, %s34
      %p85 = scmp.eq.s32.totalorder %s84, 0
      %s87 = sadd.s32 %s86, 1
      %s88 = scalar_select %p85, %s86, %s87
      %p91 = pneg %p85
      %p92 = scmp.eq.s32.totalorder %s15, 1
      %p93 = por %p91, %p92
      %p94 = scmp.ne.s32.totalorder %s86, %s89
      %p95 = scmp.eq.s32.totalorder %s15, 0
      %p96 = por %p94, %p95
      %p97 = scmp.ne.s32.totalorder %s86, %s89
      %p98 = scmp.eq.s32.totalorder %s20, 1
      %p99 = por %p97, %p98
      %p100 = scmp.ne.s32.totalorder %s89, %s90
      %p101 = scmp.eq.s32.totalorder %s20, 0
      %p102 = por %p100, %p101
      %p103 = scmp.ne.s32.totalorder %s89, %s90
      %p104 = scmp.eq.s32.totalorder %s21, 1
      %p105 = por %p103, %p104
      %p107 = scmp.ne.s32.totalorder %s90, %s106
      %p108 = scmp.eq.s32.totalorder %s21, 0
      %p109 = por %p107, %p108
      %s110 = ssub.s32 %s22, %s34
      %p111 = scmp.eq.s32.totalorder %s110, 0
      %s113 = sadd.s32 %s112, 1
      %s114 = scalar_select %p111, %s112, %s113
      %p117 = pneg %p111
      %p118 = scmp.eq.s32.totalorder %s15, 1
      %p119 = por %p117, %p118
      %p120 = scmp.ne.s32.totalorder %s112, %s115
      %p121 = scmp.eq.s32.totalorder %s15, 0
      %p122 = por %p120, %p121
      %p123 = scmp.ne.s32.totalorder %s112, %s115
      %p124 = scmp.eq.s32.totalorder %s20, 1
      %p125 = por %p123, %p124
      %p126 = scmp.ne.s32.totalorder %s115, %s116
      %p127 = scmp.eq.s32.totalorder %s20, 0
      %p128 = por %p126, %p127
      %p129 = scmp.ne.s32.totalorder %s115, %s116
      %p130 = scmp.eq.s32.totalorder %s21, 1
      %p131 = por %p129, %p130
      %p133 = scmp.ne.s32.totalorder %s116, %s132
      %p134 = scmp.eq.s32.totalorder %s21, 0
      %p135 = por %p133, %p134
      %p136 = scmp.le.s32.totalorder 1, %s15
      %p137 = scmp.lt.s32.totalorder %s15, 3
      %p138 = pnand %p136, %p137
      %p139 = pneg %p138
      // Predicated region
      $region9: #{dann_backbone_forward.1} parent=5 // pred_check
        _
      $region10: #{dann_backbone_forward.1} parent=5 // pred_check_branch
        %141 = sbr.rel (%p138) target = $region12
      $region11: #{dann_backbone_forward.1} parent=5 // pred_region
        %s142 = ssub.s32 %s15, 1
        // Predicated region
        $region13: #{dann_backbone_forward.1} parent=11 // pred_check
          %p143 = pneg %p48
        $region14: #{dann_backbone_forward.1} parent=11 // pred_check_branch
          %145 = sbr.rel (%p143) target = $region16
        $region15: #{dann_backbone_forward.1} parent=11 // pred_region
          _
        $region16: #{dann_backbone_forward.1} parent=11 // pred_fallthru
          _
      $region12: #{dann_backbone_forward.1} parent=5 // pred_fallthru
        _
      %p146 = scmp.lt.s32.totalorder %s15, 2
      // Predicated region
      $region17: #{dann_backbone_forward.1} parent=5 // pred_check
        %p147 = pneg %p146
      $region18: #{dann_backbone_forward.1} parent=5 // pred_check_branch
        %149 = sbr.rel (%p147) target = $region20
      $region19: #{dann_backbone_forward.1} parent=5 // pred_region
        // Predicated region
        $region21: #{dann_backbone_forward.1} parent=19 // pred_check
          %p150 = pneg %p70
        $region22: #{dann_backbone_forward.1} parent=19 // pred_check_branch
          %152 = sbr.rel (%p150) target = $region24
        $region23: #{dann_backbone_forward.1} parent=19 // pred_region
          %s153 = sand.u32 %s60, 1
          %s154 = scalar_lea.sflag [#allocation3], %s153
          %s155 = sand.u32 %s60, 1
          %s156 = smul.addr %s155, 512
          %s157 = scalar_lea.vmem [#allocation2], %s156
          %s158 = smul.u32 128, %s23
          %160 = vsyncadd %s154, 0
          %s161 = smul.addr %s158, 2
          %s162 = sadd.s32 %s22, %s161
          %s163 = smul.addr %s162, 4
          %s164 = scalar_lea.hbm %s1, %s163
          %s165 = sshll.u32 %s164, 4
          %s166 = int_to_ptr.hbm [resolvable:$true] %s165
          %s167 = sshll.u32 %s157, 4
          %s168 = int_to_ptr.vmem [resolvable:$true] %s167
          %173 = dma.hbm_to_vmem [thread:$0]  %s166, 8192, %s168, %s154, 128, 64, 4
        $region24: #{dann_backbone_forward.1} parent=19 // pred_fallthru
          _
        // Predicated region
        $region25: #{dann_backbone_forward.1} parent=19 // pred_check
          %p174 = pneg %p96
        $region26: #{dann_backbone_forward.1} parent=19 // pred_check_branch
          %176 = sbr.rel (%p174) target = $region28
        $region27: #{dann_backbone_forward.1} parent=19 // pred_region
          %p177 = scmp.lt.s32.totalorder %s22, 1
          %s178 = scalar_select %p177, %s22, 1
          %s179 = scalar_lea.vmem %s2, %s178
        $region28: #{dann_backbone_forward.1} parent=19 // pred_fallthru
          _
      $region20: #{dann_backbone_forward.1} parent=5 // pred_fallthru
        _
      %p180 = scmp.le.s32.totalorder 1, %s15
      %p181 = scmp.lt.s32.totalorder %s15, 3
      %p182 = pnand %p180, %p181
      %p183 = pneg %p182
      // Predicated region
      $region29: #{dann_backbone_forward.1} parent=5 // pred_check
        _
      $region30: #{dann_backbone_forward.1} parent=5 // pred_check_branch
        %185 = sbr.rel (%p182) target = $region32
      $region31: #{dann_backbone_forward.1} parent=5 // pred_region
        %s186 = ssub.s32 %s15, 1
        %s187 = sand.u32 %s63, 1
        %s188 = scalar_lea.sflag [#allocation3], %s187
        %s189 = sand.u32 %s63, 1
        %s190 = smul.addr %s189, 512
        %s191 = scalar_lea.vmem [#allocation2], %s190
        // Predicated region
        $region33: #{dann_backbone_forward.1} parent=31 // pred_check
          %p192 = pneg %p76
        $region34: #{dann_backbone_forward.1} parent=31 // pred_check_branch
          %194 = sbr.rel (%p192) target = $region36
        $region35: #{dann_backbone_forward.1} parent=31 // pred_region
          %196 = dma.done %s188, 8192
        $region36: #{dann_backbone_forward.1} parent=31 // pred_fallthru
          _
        %p197 = pneg %p48
        %p198 = pneg %p45
        %s199 = sand.u32 %s63, 1
        %s200 = scalar_lea.sflag [#allocation3], %s199
        %s201 = sand.u32 %s63, 1
        %s202 = smul.addr %s201, 512
        %s203 = scalar_lea.vmem [#allocation2], %s202
        %p204 = pneg %p76
        %p205 = pneg %p73
        %p206 = scmp.lt.s32.totalorder %s24, 1
        %s207 = scalar_select %p206, %s24, 1
        %s208 = scalar_lea.vmem %s2, %s207
        %p209 = pneg %p102
        %p210 = pneg %p99
        %p211 = pneg %p128
        %p212 = pneg %p125
        %s213 = sand.u32 %s115, 1
        %s214 = scalar_lea.sflag [#allocation4], %s213
        %s215 = sand.u32 %s115, 1
        %s216 = smul.addr %s215, 2
        %s217 = scalar_lea.vmem [#allocation5], %s216
        %s218 = smul.u32 128, %s25
        %p219 = scmp.lt.s32.totalorder %s24, 1
        %s220 = scalar_select %p219, %s24, 1
        %s221 = scalar_lea.vmem %s2, %s220
        %p222 = scmp.eq.s32.totalorder %s25, 0
        // Predicated region
        $region37: #{dann_backbone_forward.1} parent=31 // pred_check
          %p223 = pneg %p222
        $region38: #{dann_backbone_forward.1} parent=31 // pred_check_branch
          %225 = sbr.rel (%p223) target = $region40
        $region39: #{dann_backbone_forward.1} parent=31 // pred_region
          %226 = vst [vmem:[%s217] sm:$0x3] 0.0
        $region40: #{dann_backbone_forward.1} parent=31 // pred_fallthru
          _
        %s227 = smul.u32 %s25, 8
        %s228 = scalar_lea.vmem %s0, %s227
        %v229 = vld [vmem:[%s228] sm:$0xff]
        %v230 = vld [vmem:[%s217] sm:$0x3]
        %v231 = vld [vmem:[%s191] sm:$0xf]
        %v232 = vld [vmem:[%s191 + $0x4] sm:$0xf]
        %v233 = vld [vmem:[%s191 + $0x8] sm:$0xf]
        %v234 = vld [vmem:[%s191 + $0xc] sm:$0xf]
        %v235 = vld [vmem:[%s191 + $0x10] sm:$0xf]
        %v236 = vld [vmem:[%s191 + $0x14] sm:$0xf]
        %v237 = vld [vmem:[%s191 + $0x18] sm:$0xf]
        %v238 = vld [vmem:[%s191 + $0x1c] sm:$0xf]
        %v239 = vld [vmem:[%s191 + $0x20] sm:$0xf]
        %v240 = vld [vmem:[%s191 + $0x24] sm:$0xf]
        %v241 = vld [vmem:[%s191 + $0x28] sm:$0xf]
        %v242 = vld [vmem:[%s191 + $0x2c] sm:$0xf]
        %v243 = vld [vmem:[%s191 + $0x30] sm:$0xf]
        %v244 = vld [vmem:[%s191 + $0x34] sm:$0xf]
        %v245 = vld [vmem:[%s191 + $0x38] sm:$0xf]
        %v246 = vld [vmem:[%s191 + $0x3c] sm:$0xf]
        %v247 = vld [vmem:[%s191 + $0x40] sm:$0xf]
        %v248 = vld [vmem:[%s191 + $0x44] sm:$0xf]
        %v249 = vld [vmem:[%s191 + $0x48] sm:$0xf]
        %v250 = vld [vmem:[%s191 + $0x4c] sm:$0xf]
        %v251 = vld [vmem:[%s191 + $0x50] sm:$0xf]
        %v252 = vld [vmem:[%s191 + $0x54] sm:$0xf]
        %v253 = vld [vmem:[%s191 + $0x58] sm:$0xf]
        %v254 = vld [vmem:[%s191 + $0x5c] sm:$0xf]
        %v255 = vld [vmem:[%s191 + $0x60] sm:$0xf]
        %v256 = vld [vmem:[%s191 + $0x64] sm:$0xf]
        %v257 = vld [vmem:[%s191 + $0x68] sm:$0xf]
        %v258 = vld [vmem:[%s191 + $0x6c] sm:$0xf]
        %v259 = vld [vmem:[%s191 + $0x70] sm:$0xf]
        %v260 = vld [vmem:[%s191 + $0x74] sm:$0xf]
        %v261 = vld [vmem:[%s191 + $0x78] sm:$0xf]
        %v262 = vld [vmem:[%s191 + $0x7c] sm:$0xf]
        %v263 = vld [vmem:[%s191 + $0x80] sm:$0xf]
        %v264 = vld [vmem:[%s191 + $0x84] sm:$0xf]
        %v265 = vld [vmem:[%s191 + $0x88] sm:$0xf]
        %v266 = vld [vmem:[%s191 + $0x8c] sm:$0xf]
        %v267 = vld [vmem:[%s191 + $0x90] sm:$0xf]
        %v268 = vld [vmem:[%s191 + $0x94] sm:$0xf]
        %v269 = vld [vmem:[%s191 + $0x98] sm:$0xf]
        %v270 = vld [vmem:[%s191 + $0x9c] sm:$0xf]
        %v271 = vld [vmem:[%s191 + $0xa0] sm:$0xf]
        %v272 = vld [vmem:[%s191 + $0xa4] sm:$0xf]
        %v273 = vld [vmem:[%s191 + $0xa8] sm:$0xf]
        %v274 = vld [vmem:[%s191 + $0xac] sm:$0xf]
        %v275 = vld [vmem:[%s191 + $0xb0] sm:$0xf]
        %v276 = vld [vmem:[%s191 + $0xb4] sm:$0xf]
        %v277 = vld [vmem:[%s191 + $0xb8] sm:$0xf]
        %v278 = vld [vmem:[%s191 + $0xbc] sm:$0xf]
        %v279 = vld [vmem:[%s191 + $0xc0] sm:$0xf]
        %v280 = vld [vmem:[%s191 + $0xc4] sm:$0xf]
        %v281 = vld [vmem:[%s191 + $0xc8] sm:$0xf]
        %v282 = vld [vmem:[%s191 + $0xcc] sm:$0xf]
        %v283 = vld [vmem:[%s191 + $0xd0] sm:$0xf]
        %v284 = vld [vmem:[%s191 + $0xd4] sm:$0xf]
        %v285 = vld [vmem:[%s191 + $0xd8] sm:$0xf]
        %v286 = vld [vmem:[%s191 + $0xdc] sm:$0xf]
        %v287 = vld [vmem:[%s191 + $0xe0] sm:$0xf]
        %v288 = vld [vmem:[%s191 + $0xe4] sm:$0xf]
        %v289 = vld [vmem:[%s191 + $0xe8] sm:$0xf]
        %v290 = vld [vmem:[%s191 + $0xec] sm:$0xf]
        %v291 = vld [vmem:[%s191 + $0xf0] sm:$0xf]
        %v292 = vld [vmem:[%s191 + $0xf4] sm:$0xf]
        %v293 = vld [vmem:[%s191 + $0xf8] sm:$0xf]
        %v294 = vld [vmem:[%s191 + $0xfc] sm:$0xf]
        %v295 = vld [vmem:[%s191 + $0x100] sm:$0xf]
        %v296 = vld [vmem:[%s191 + $0x104] sm:$0xf]
        %v297 = vld [vmem:[%s191 + $0x108] sm:$0xf]
        %v298 = vld [vmem:[%s191 + $0x10c] sm:$0xf]
        %v299 = vld [vmem:[%s191 + $0x110] sm:$0xf]
        %v300 = vld [vmem:[%s191 + $0x114] sm:$0xf]
        %v301 = vld [vmem:[%s191 + $0x118] sm:$0xf]
        %v302 = vld [vmem:[%s191 + $0x11c] sm:$0xf]
        %v303 = vld [vmem:[%s191 + $0x120] sm:$0xf]
        %v304 = vld [vmem:[%s191 + $0x124] sm:$0xf]
        %v305 = vld [vmem:[%s191 + $0x128] sm:$0xf]
        %v306 = vld [vmem:[%s191 + $0x12c] sm:$0xf]
        %v307 = vld [vmem:[%s191 + $0x130] sm:$0xf]
        %v308 = vld [vmem:[%s191 + $0x134] sm:$0xf]
        %v309 = vld [vmem:[%s191 + $0x138] sm:$0xf]
        %v310 = vld [vmem:[%s191 + $0x13c] sm:$0xf]
        %v311 = vld [vmem:[%s191 + $0x140] sm:$0xf]
        %v312 = vld [vmem:[%s191 + $0x144] sm:$0xf]
        %v313 = vld [vmem:[%s191 + $0x148] sm:$0xf]
        %v314 = vld [vmem:[%s191 + $0x14c] sm:$0xf]
        %v315 = vld [vmem:[%s191 + $0x150] sm:$0xf]
        %v316 = vld [vmem:[%s191 + $0x154] sm:$0xf]
        %v317 = vld [vmem:[%s191 + $0x158] sm:$0xf]
        %v318 = vld [vmem:[%s191 + $0x15c] sm:$0xf]
        %v319 = vld [vmem:[%s191 + $0x160] sm:$0xf]
        %v320 = vld [vmem:[%s191 + $0x164] sm:$0xf]
        %v321 = vld [vmem:[%s191 + $0x168] sm:$0xf]
        %v322 = vld [vmem:[%s191 + $0x16c] sm:$0xf]
        %v323 = vld [vmem:[%s191 + $0x170] sm:$0xf]
        %v324 = vld [vmem:[%s191 + $0x174] sm:$0xf]
        %v325 = vld [vmem:[%s191 + $0x178] sm:$0xf]
        %v326 = vld [vmem:[%s191 + $0x17c] sm:$0xf]
        %v327 = vld [vmem:[%s191 + $0x180] sm:$0xf]
        %v328 = vld [vmem:[%s191 + $0x184] sm:$0xf]
        %v329 = vld [vmem:[%s191 + $0x188] sm:$0xf]
        %v330 = vld [vmem:[%s191 + $0x18c] sm:$0xf]
        %v331 = vld [vmem:[%s191 + $0x190] sm:$0xf]
        %v332 = vld [vmem:[%s191 + $0x194] sm:$0xf]
        %v333 = vld [vmem:[%s191 + $0x198] sm:$0xf]
        %v334 = vld [vmem:[%s191 + $0x19c] sm:$0xf]
        %v335 = vld [vmem:[%s191 + $0x1a0] sm:$0xf]
        %v336 = vld [vmem:[%s191 + $0x1a4] sm:$0xf]
        %v337 = vld [vmem:[%s191 + $0x1a8] sm:$0xf]
        %v338 = vld [vmem:[%s191 + $0x1ac] sm:$0xf]
        %v339 = vld [vmem:[%s191 + $0x1b0] sm:$0xf]
        %v340 = vld [vmem:[%s191 + $0x1b4] sm:$0xf]
        %v341 = vld [vmem:[%s191 + $0x1b8] sm:$0xf]
        %v342 = vld [vmem:[%s191 + $0x1bc] sm:$0xf]
        %v343 = vld [vmem:[%s191 + $0x1c0] sm:$0xf]
        %v344 = vld [vmem:[%s191 + $0x1c4] sm:$0xf]
        %v345 = vld [vmem:[%s191 + $0x1c8] sm:$0xf]
        %v346 = vld [vmem:[%s191 + $0x1cc] sm:$0xf]
        %v347 = vld [vmem:[%s191 + $0x1d0] sm:$0xf]
        %v348 = vld [vmem:[%s191 + $0x1d4] sm:$0xf]
        %v349 = vld [vmem:[%s191 + $0x1d8] sm:$0xf]
        %v350 = vld [vmem:[%s191 + $0x1dc] sm:$0xf]
        %v351 = vld [vmem:[%s191 + $0x1e0] sm:$0xf]
        %v352 = vld [vmem:[%s191 + $0x1e4] sm:$0xf]
        %v353 = vld [vmem:[%s191 + $0x1e8] sm:$0xf]
        %v354 = vld [vmem:[%s191 + $0x1ec] sm:$0xf]
        %v355 = vld [vmem:[%s191 + $0x1f0] sm:$0xf]
        %v356 = vld [vmem:[%s191 + $0x1f4] sm:$0xf]
        %v357 = vld [vmem:[%s191 + $0x1f8] sm:$0xf]
        %v358 = vld [vmem:[%s191 + $0x1fc] sm:$0xf]
        %360 = vst [vmem:[#allocation1] ss:$9 sm:$0xff] %v229
        %v361 = vld [vmem:[#allocation1] sm:$0xff]
        %v362 = vld [vmem:[#allocation1 + $0x9] sm:$0xff]
        %v363 = vld [vmem:[#allocation1 + $0x12] sm:$0xff]
        %v364 = vld [vmem:[#allocation1 + $0x1b] sm:$0xff]
        %v365 = vld [vmem:[#allocation1 + $0x24] sm:$0xff]
        %v366 = vld [vmem:[#allocation1 + $0x2d] sm:$0xff]
        %v367 = vld [vmem:[#allocation1 + $0x36] sm:$0xff]
        %v368 = vld [vmem:[#allocation1 + $0x3f] sm:$0xff]
        %v505 = vunpack.c.l.b16 %v231
        %v506 = vunpack.c.l.b16 %v232
        %v507 = vunpack.c.l.b16 %v233
        %v508 = vunpack.c.l.b16 %v234
        %v509 = vunpack.c.l.b16 %v235
        %v510 = vunpack.c.l.b16 %v236
        %v511 = vunpack.c.l.b16 %v237
        %v512 = vunpack.c.l.b16 %v238
        %v513 = vunpack.c.l.b16 %v239
        %v514 = vunpack.c.l.b16 %v240
        %v515 = vunpack.c.l.b16 %v241
        %v516 = vunpack.c.l.b16 %v242
        %v517 = vunpack.c.l.b16 %v243
        %v518 = vunpack.c.l.b16 %v244
        %v519 = vunpack.c.l.b16 %v245
        %v520 = vunpack.c.l.b16 %v246
        %v521 = vunpack.c.l.b16 %v247
        %v522 = vunpack.c.l.b16 %v248
        %v523 = vunpack.c.l.b16 %v249
        %v524 = vunpack.c.l.b16 %v250
        %v525 = vunpack.c.l.b16 %v251
        %v526 = vunpack.c.l.b16 %v252
        %v527 = vunpack.c.l.b16 %v253
        %v528 = vunpack.c.l.b16 %v254
        %v529 = vunpack.c.l.b16 %v255
        %v530 = vunpack.c.l.b16 %v256
        %v531 = vunpack.c.l.b16 %v257
        %v532 = vunpack.c.l.b16 %v258
        %v533 = vunpack.c.l.b16 %v259
        %v534 = vunpack.c.l.b16 %v260
        %v535 = vunpack.c.l.b16 %v261
        %v536 = vunpack.c.l.b16 %v262
        %v537 = vunpack.c.l.b16 %v263
        %v538 = vunpack.c.l.b16 %v264
        %v539 = vunpack.c.l.b16 %v265
        %v540 = vunpack.c.l.b16 %v266
        %v541 = vunpack.c.l.b16 %v267
        %v542 = vunpack.c.l.b16 %v268
        %v543 = vunpack.c.l.b16 %v269
        %v544 = vunpack.c.l.b16 %v270
        %v545 = vunpack.c.l.b16 %v271
        %v546 = vunpack.c.l.b16 %v272
        %v547 = vunpack.c.l.b16 %v273
        %v548 = vunpack.c.l.b16 %v274
        %v549 = vunpack.c.l.b16 %v275
        %v550 = vunpack.c.l.b16 %v276
        %v551 = vunpack.c.l.b16 %v277
        %v552 = vunpack.c.l.b16 %v278
        %v553 = vunpack.c.l.b16 %v279
        %v554 = vunpack.c.l.b16 %v280
        %v555 = vunpack.c.l.b16 %v281
        %v556 = vunpack.c.l.b16 %v282
        %v557 = vunpack.c.l.b16 %v283
        %v558 = vunpack.c.l.b16 %v284
        %v559 = vunpack.c.l.b16 %v285
        %v560 = vunpack.c.l.b16 %v286
        %v561 = vunpack.c.l.b16 %v287
        %v562 = vunpack.c.l.b16 %v288
        %v563 = vunpack.c.l.b16 %v289
        %v564 = vunpack.c.l.b16 %v290
        %v565 = vunpack.c.l.b16 %v291
        %v566 = vunpack.c.l.b16 %v292
        %v567 = vunpack.c.l.b16 %v293
        %v568 = vunpack.c.l.b16 %v294
        %v569 = vunpack.c.l.b16 %v295
        %v570 = vunpack.c.l.b16 %v296
        %v571 = vunpack.c.l.b16 %v297
        %v572 = vunpack.c.l.b16 %v298
        %v573 = vunpack.c.l.b16 %v299
        %v574 = vunpack.c.l.b16 %v300
        %v575 = vunpack.c.l.b16 %v301
        %v576 = vunpack.c.l.b16 %v302
        %v577 = vunpack.c.l.b16 %v303
        %v578 = vunpack.c.l.b16 %v304
        %v579 = vunpack.c.l.b16 %v305
        %v580 = vunpack.c.l.b16 %v306
        %v581 = vunpack.c.l.b16 %v307
        %v582 = vunpack.c.l.b16 %v308
        %v583 = vunpack.c.l.b16 %v309
        %v584 = vunpack.c.l.b16 %v310
        %v585 = vunpack.c.l.b16 %v311
        %v586 = vunpack.c.l.b16 %v312
        %v587 = vunpack.c.l.b16 %v313
        %v588 = vunpack.c.l.b16 %v314
        %v589 = vunpack.c.l.b16 %v315
        %v590 = vunpack.c.l.b16 %v316
        %v591 = vunpack.c.l.b16 %v317
        %v592 = vunpack.c.l.b16 %v318
        %v593 = vunpack.c.l.b16 %v319
        %v594 = vunpack.c.l.b16 %v320
        %v595 = vunpack.c.l.b16 %v321
        %v596 = vunpack.c.l.b16 %v322
        %v597 = vunpack.c.l.b16 %v323
        %v598 = vunpack.c.l.b16 %v324
        %v599 = vunpack.c.l.b16 %v325
        %v600 = vunpack.c.l.b16 %v326
        %v601 = vunpack.c.l.b16 %v327
        %v602 = vunpack.c.l.b16 %v328
        %v603 = vunpack.c.l.b16 %v329
        %v604 = vunpack.c.l.b16 %v330
        %v605 = vunpack.c.l.b16 %v331
        %v606 = vunpack.c.l.b16 %v332
        %v607 = vunpack.c.l.b16 %v333
        %v608 = vunpack.c.l.b16 %v334
        %v609 = vunpack.c.l.b16 %v335
        %v610 = vunpack.c.l.b16 %v336
        %v611 = vunpack.c.l.b16 %v337
        %v612 = vunpack.c.l.b16 %v338
        %v613 = vunpack.c.l.b16 %v339
        %v614 = vunpack.c.l.b16 %v340
        %v615 = vunpack.c.l.b16 %v341
        %v616 = vunpack.c.l.b16 %v342
        %v617 = vunpack.c.l.b16 %v343
        %v618 = vunpack.c.l.b16 %v344
        %v619 = vunpack.c.l.b16 %v345
        %v620 = vunpack.c.l.b16 %v346
        %v621 = vunpack.c.l.b16 %v347
        %v622 = vunpack.c.l.b16 %v348
        %v623 = vunpack.c.l.b16 %v349
        %v624 = vunpack.c.l.b16 %v350
        %v625 = vunpack.c.l.b16 %v351
        %v626 = vunpack.c.l.b16 %v352
        %v627 = vunpack.c.l.b16 %v353
        %v628 = vunpack.c.l.b16 %v354
        %v629 = vunpack.c.l.b16 %v355
        %v630 = vunpack.c.l.b16 %v356
        %v631 = vunpack.c.l.b16 %v357
        %v632 = vunpack.c.l.b16 %v358
        %v633 = vpack.c.b16 %v506, %v505
        %v634 = vpack.c.b16 %v508, %v507
        %v635 = vpack.c.b16 %v510, %v509
        %v636 = vpack.c.b16 %v512, %v511
        %v637 = vpack.c.b16 %v514, %v513
        %v638 = vpack.c.b16 %v516, %v515
        %v639 = vpack.c.b16 %v518, %v517
        %v640 = vpack.c.b16 %v520, %v519
        %v641 = vpack.c.b16 %v522, %v521
        %v642 = vpack.c.b16 %v524, %v523
        %v643 = vpack.c.b16 %v526, %v525
        %v644 = vpack.c.b16 %v528, %v527
        %v645 = vpack.c.b16 %v530, %v529
        %v646 = vpack.c.b16 %v532, %v531
        %v647 = vpack.c.b16 %v534, %v533
        %v648 = vpack.c.b16 %v536, %v535
        %v649 = vpack.c.b16 %v538, %v537
        %v650 = vpack.c.b16 %v540, %v539
        %v651 = vpack.c.b16 %v542, %v541
        %v652 = vpack.c.b16 %v544, %v543
        %v653 = vpack.c.b16 %v546, %v545
        %v654 = vpack.c.b16 %v548, %v547
        %v655 = vpack.c.b16 %v550, %v549
        %v656 = vpack.c.b16 %v552, %v551
        %v657 = vpack.c.b16 %v554, %v553
        %v658 = vpack.c.b16 %v556, %v555
        %v659 = vpack.c.b16 %v558, %v557
        %v660 = vpack.c.b16 %v560, %v559
        %v661 = vpack.c.b16 %v562, %v561
        %v662 = vpack.c.b16 %v564, %v563
        %v663 = vpack.c.b16 %v566, %v565
        %v664 = vpack.c.b16 %v568, %v567
        %v665 = vpack.c.b16 %v570, %v569
        %v666 = vpack.c.b16 %v572, %v571
        %v667 = vpack.c.b16 %v574, %v573
        %v668 = vpack.c.b16 %v576, %v575
        %v669 = vpack.c.b16 %v578, %v577
        %v670 = vpack.c.b16 %v580, %v579
        %v671 = vpack.c.b16 %v582, %v581
        %v672 = vpack.c.b16 %v584, %v583
        %v673 = vpack.c.b16 %v586, %v585
        %v674 = vpack.c.b16 %v588, %v587
        %v675 = vpack.c.b16 %v590, %v589
        %v676 = vpack.c.b16 %v592, %v591
        %v677 = vpack.c.b16 %v594, %v593
        %v678 = vpack.c.b16 %v596, %v595
        %v679 = vpack.c.b16 %v598, %v597
        %v680 = vpack.c.b16 %v600, %v599
        %v681 = vpack.c.b16 %v602, %v601
        %v682 = vpack.c.b16 %v604, %v603
        %v683 = vpack.c.b16 %v606, %v605
        %v684 = vpack.c.b16 %v608, %v607
        %v685 = vpack.c.b16 %v610, %v609
        %v686 = vpack.c.b16 %v612, %v611
        %v687 = vpack.c.b16 %v614, %v613
        %v688 = vpack.c.b16 %v616, %v615
        %v689 = vpack.c.b16 %v618, %v617
        %v690 = vpack.c.b16 %v620, %v619
        %v691 = vpack.c.b16 %v622, %v621
        %v692 = vpack.c.b16 %v624, %v623
        %v693 = vpack.c.b16 %v626, %v625
        %v694 = vpack.c.b16 %v628, %v627
        %v695 = vpack.c.b16 %v630, %v629
        %v696 = vpack.c.b16 %v632, %v631
        %761 = vmatpush.bf16.msra.mxu0 %v640
        %762 = vmatpush.bf16.msra.mxu0 %v639
        %763 = vmatpush.bf16.msra.mxu0 %v638
        %764 = vmatpush.bf16.msra.mxu0 %v637
        %765 = vmatpush.bf16.msra.mxu0 %v636
        %766 = vmatpush.bf16.msra.mxu0 %v635
        %767 = vmatpush.bf16.msra.mxu0 %v634
        %768 = vmatpush.bf16.msra.mxu0 %v633
        %769 = vmatmul.bf16.gmra.mxu0 %v361
        %v770 = vpop.f32.mrf.mxu0
        %v771 = vadd.f32 0.0, %v770
        %v772 = vpop.f32.mrf.mxu0
        %773 = vdwg.mxu0
        %774 = vmatpush.bf16.msra.mxu0 %v648
        %775 = vmatpush.bf16.msra.mxu0 %v647
        %776 = vmatpush.bf16.msra.mxu0 %v646
        %777 = vmatpush.bf16.msra.mxu0 %v645
        %778 = vmatpush.bf16.msra.mxu0 %v644
        %779 = vmatpush.bf16.msra.mxu0 %v643
        %780 = vmatpush.bf16.msra.mxu0 %v642
        %781 = vmatpush.bf16.msra.mxu0 %v641
        %782 = vmatmul.bf16.gmra.mxu0 %v362
        %v783 = vpop.f32.mrf.mxu0
        %v784 = vadd.f32 %v771, %v783
        %v785 = vpop.f32.mrf.mxu0
        %786 = vdwg.mxu0
        %787 = vmatpush.bf16.msra.mxu0 %v656
        %788 = vmatpush.bf16.msra.mxu0 %v655
        %789 = vmatpush.bf16.msra.mxu0 %v654
        %790 = vmatpush.bf16.msra.mxu0 %v653
        %791 = vmatpush.bf16.msra.mxu0 %v652
        %792 = vmatpush.bf16.msra.mxu0 %v651
        %793 = vmatpush.bf16.msra.mxu0 %v650
        %794 = vmatpush.bf16.msra.mxu0 %v649
        %795 = vmatmul.bf16.gmra.mxu0 %v363
        %v796 = vpop.f32.mrf.mxu0
        %v797 = vadd.f32 %v784, %v796
        %v798 = vpop.f32.mrf.mxu0
        %799 = vdwg.mxu0
        %800 = vmatpush.bf16.msra.mxu0 %v664
        %801 = vmatpush.bf16.msra.mxu0 %v663
        %802 = vmatpush.bf16.msra.mxu0 %v662
        %803 = vmatpush.bf16.msra.mxu0 %v661
        %804 = vmatpush.bf16.msra.mxu0 %v660
        %805 = vmatpush.bf16.msra.mxu0 %v659
        %806 = vmatpush.bf16.msra.mxu0 %v658
        %807 = vmatpush.bf16.msra.mxu0 %v657
        %808 = vmatmul.bf16.gmra.mxu0 %v364
        %v809 = vpop.f32.mrf.mxu0
        %v810 = vadd.f32 %v797, %v809
        %v811 = vpop.f32.mrf.mxu0
        %812 = vdwg.mxu0
        %813 = vmatpush.bf16.msra.mxu0 %v672
        %814 = vmatpush.bf16.msra.mxu0 %v671
        %815 = vmatpush.bf16.msra.mxu0 %v670
        %816 = vmatpush.bf16.msra.mxu0 %v669
        %817 = vmatpush.bf16.msra.mxu0 %v668
        %818 = vmatpush.bf16.msra.mxu0 %v667
        %819 = vmatpush.bf16.msra.mxu0 %v666
        %820 = vmatpush.bf16.msra.mxu0 %v665
        %821 = vmatmul.bf16.gmra.mxu0 %v365
        %v822 = vpop.f32.mrf.mxu0
        %v823 = vadd.f32 %v810, %v822
        %v824 = vpop.f32.mrf.mxu0
        %825 = vdwg.mxu0
        %826 = vmatpush.bf16.msra.mxu0 %v680
        %827 = vmatpush.bf16.msra.mxu0 %v679
        %828 = vmatpush.bf16.msra.mxu0 %v678
        %829 = vmatpush.bf16.msra.mxu0 %v677
        %830 = vmatpush.bf16.msra.mxu0 %v676
        %831 = vmatpush.bf16.msra.mxu0 %v675
        %832 = vmatpush.bf16.msra.mxu0 %v674
        %833 = vmatpush.bf16.msra.mxu0 %v673
        %834 = vmatmul.bf16.gmra.mxu0 %v366
        %v835 = vpop.f32.mrf.mxu0
        %v836 = vadd.f32 %v823, %v835
        %v837 = vpop.f32.mrf.mxu0
        %838 = vdwg.mxu0
        %839 = vmatpush.bf16.msra.mxu0 %v688
        %840 = vmatpush.bf16.msra.mxu0 %v687
        %841 = vmatpush.bf16.msra.mxu0 %v686
        %842 = vmatpush.bf16.msra.mxu0 %v685
        %843 = vmatpush.bf16.msra.mxu0 %v684
        %844 = vmatpush.bf16.msra.mxu0 %v683
        %845 = vmatpush.bf16.msra.mxu0 %v682
        %846 = vmatpush.bf16.msra.mxu0 %v681
        %847 = vmatmul.bf16.gmra.mxu0 %v367
        %v848 = vpop.f32.mrf.mxu0
        %v849 = vadd.f32 %v836, %v848
        %v850 = vpop.f32.mrf.mxu0
        %851 = vdwg.mxu0
        %852 = vmatpush.bf16.msra.mxu0 %v696
        %853 = vmatpush.bf16.msra.mxu0 %v695
        %854 = vmatpush.bf16.msra.mxu0 %v694
        %855 = vmatpush.bf16.msra.mxu0 %v693
        %856 = vmatpush.bf16.msra.mxu0 %v692
        %857 = vmatpush.bf16.msra.mxu0 %v691
        %858 = vmatpush.bf16.msra.mxu0 %v690
        %859 = vmatpush.bf16.msra.mxu0 %v689
        %860 = vmatmul.bf16.gmra.mxu0 %v368
        %v861 = vpop.f32.mrf.mxu0
        %v862 = vadd.f32 %v849, %v861
        %v863 = vpop.f32.mrf.mxu0
        %864 = vdwg.mxu0
        %v865 = vadd.f32 %v230, %v862
        %866 = vst [vmem:[%s217] sm:$0x3] %v865
        // Predicated region
        $region41: #{dann_backbone_forward.1} parent=31 // pred_check
          %p867 = pneg %p222
        $region42: #{dann_backbone_forward.1} parent=31 // pred_check_branch
          %869 = sbr.rel (%p867) target = $region44
        $region43: #{dann_backbone_forward.1} parent=31 // pred_region
          %v870 = vld [vmem:[%s217] sm:$0x3]
          %v871 = vld [vmem:[%s221] sm:$0x1]
          %v873 = vperm.slane %v871, 0
          %v875 = vadd.f32 %v870, %v873
          %v876 = vmax.f32 %v875, 0.0
          %877 = vst [vmem:[%s217] sm:$0x3] %v876
        $region44: #{dann_backbone_forward.1} parent=31 // pred_fallthru
          _
        %s878 = sand.u32 %s115, 1
        %s879 = scalar_lea.sflag [#allocation4], %s878
        %s880 = sand.u32 %s115, 1
        %s881 = smul.addr %s880, 2
        %s882 = scalar_lea.vmem [#allocation5], %s881
        // Predicated region
        $region45: #{dann_backbone_forward.1} parent=31 // pred_check
          %p883 = pneg %p125
        $region46: #{dann_backbone_forward.1} parent=31 // pred_check_branch
          %885 = sbr.rel (%p883) target = $region48
        $region47: #{dann_backbone_forward.1} parent=31 // pred_region
          %887 = vsyncadd %s879, 0
          %s888 = smul.addr %s24, 2
          %s889 = scalar_lea.hbm %s3, %s888
          %s891 = sshll.u32 %s882, 4
          %s892 = int_to_ptr.vmem [resolvable:$true] %s891
          %s893 = sshll.u32 %s889, 4
          %s894 = int_to_ptr.hbm [resolvable:$true] %s893
          %896 = dma.vmem_to_hbm [thread:$0]  %s892, 32, %s894, %s879
        $region48: #{dann_backbone_forward.1} parent=31 // pred_fallthru
          _
      $region32: #{dann_backbone_forward.1} parent=5 // pred_fallthru
        _
      %p897 = scmp.le.s32.totalorder 2, %s15
      // Predicated region
      $region49: #{dann_backbone_forward.1} parent=5 // pred_check
        %p898 = pneg %p897
      $region50: #{dann_backbone_forward.1} parent=5 // pred_check_branch
        %900 = sbr.rel (%p898) target = $region52
      $region51: #{dann_backbone_forward.1} parent=5 // pred_region
        %s901 = ssub.s32 %s15, 2
        // Predicated region
        $region53: #{dann_backbone_forward.1} parent=51 // pred_check
          %p902 = pneg %p131
        $region54: #{dann_backbone_forward.1} parent=51 // pred_check_branch
          %904 = sbr.rel (%p902) target = $region56
        $region55: #{dann_backbone_forward.1} parent=51 // pred_region
          %s905 = sand.u32 %s116, 1
          %s906 = scalar_lea.sflag [#allocation4], %s905
          %s907 = sand.u32 %s116, 1
          %s908 = smul.addr %s907, 2
          %s909 = scalar_lea.vmem [#allocation5], %s908
          %911 = dma.done %s906, 32
        $region56: #{dann_backbone_forward.1} parent=51 // pred_fallthru
          _
      $region52: #{dann_backbone_forward.1} parent=5 // pred_fallthru
        _
    $region6: #{dann_backbone_forward.1} parent=1 // loop_footer
      %s19 = sadd.s32 1, %s15
    $region7: #{dann_backbone_forward.1} parent=1 // loop_footer_branch
      %14 = sbr.rel target = $region3
    $region8: #{dann_backbone_forward.1} parent=1 // loop_exit
      _
    %912 = vsyncpa [#allocation3], 1
    %s913 = scalar_lea.sflag [#allocation3], 1
    %914 = vsyncpa %s913, 1
    %915 = vsyncpa [#allocation4], 1
    %s916 = scalar_lea.sflag [#allocation4], 1
    %917 = vsyncpa %s916, 1

</llo_original>
